<compile_context>
chip_gen: v7x
topology: tpu7x:2x2x1
jax: 0.10.0
libtpu: 0.0.40
codegen_flags: <defaults>
</compile_context>

<pallas_src>
import functools
import math

import jax
import jax.numpy as jnp
from jax.experimental import pallas as pl
from jax.experimental.pallas import tpu as pltpu


# ---------------------------------------------------------------------------
# Helpers
# ---------------------------------------------------------------------------

def _round_up(a, b):
    return (a + b - 1) // b * b


_INV_SQRT_2 = 1.0 / math.sqrt(2.0)
_SQRT_2_OVER_PI = math.sqrt(2.0 / math.pi)


def _gelu_exact(x):
    # PyTorch F.gelu default (erf-based).
    return 0.5 * x * (1.0 + jax.lax.erf(x * _INV_SQRT_2))


def _gelu_tanh(x):
    # tanh approximation: transcendental goes to the EUP slot (co-issues with MXU).
    return 0.5 * x * (1.0 + jnp.tanh(_SQRT_2_OVER_PI * (x + 0.044715 * x * x * x)))


def _vmem_capacity_bytes():
    try:
        return int(pltpu.get_tpu_info().vmem_capacity_bytes)
    except Exception:
        return 64 * 1024 * 1024  # conservative default (v7x per-TC)


# ---------------------------------------------------------------------------
# Kernels
# ---------------------------------------------------------------------------

def _ffn_kernel_resident(x_ref, w1_ref, b1_ref, w2_ref, b2_ref, o_ref, *, gelu):
    # Whole hidden dim resident in VMEM: single pass, no accumulator needed.
    h = jnp.dot(x_ref[...], w1_ref[...], preferred_element_type=jnp.float32)
    h = gelu(h + b1_ref[...])
    # dropout1: identity (eval mode)
    out = jnp.dot(h.astype(w2_ref.dtype), w2_ref[...],
                  preferred_element_type=jnp.float32)
    # dropout2: identity (eval mode)
    o_ref[...] = (out + b2_ref[...]).astype(o_ref.dtype)


def _ffn_kernel_multi_f32out(x_ref, w1_ref, b1_ref, w2_ref, b2_ref, o_ref, *, gelu):
    # Hidden dim streamed in TH slabs; the f32 output block (resident across k)
    # doubles as the accumulator -> no extra VMEM scratch.
    k = pl.program_id(1)

    @pl.when(k == 0)
    def _():
        o_ref[...] = jnp.zeros_like(o_ref)

    h = jnp.dot(x_ref[...], w1_ref[...], preferred_element_type=jnp.float32)
    h = gelu(h + b1_ref[...])
    # dropout1: identity (eval mode)
    o_ref[...] += jnp.dot(h.astype(w2_ref.dtype), w2_ref[...],
                          preferred_element_type=jnp.float32)

    @pl.when(k == pl.num_programs(1) - 1)
    def _():
        # dropout2: identity (eval mode)
        o_ref[...] = o_ref[...] + b2_ref[...]


def _ffn_kernel_multi_acc(x_ref, w1_ref, b1_ref, w2_ref, b2_ref, o_ref, acc_ref, *, gelu):
    # Hidden dim streamed; non-f32 output -> dedicated f32 VMEM accumulator.
    k = pl.program_id(1)

    @pl.when(k == 0)
    def _():
        acc_ref[...] = jnp.zeros_like(acc_ref)

    h = jnp.dot(x_ref[...], w1_ref[...], preferred_element_type=jnp.float32)
    h = gelu(h + b1_ref[...])
    # dropout1: identity (eval mode)
    acc_ref[...] += jnp.dot(h.astype(w2_ref.dtype), w2_ref[...],
                            preferred_element_type=jnp.float32)

    @pl.when(k == pl.num_programs(1) - 1)
    def _():
        # dropout2: identity (eval mode)
        o_ref[...] = (acc_ref[...] + b2_ref[...]).astype(o_ref.dtype)


# ---------------------------------------------------------------------------
# Tile selection
# ---------------------------------------------------------------------------

def _tile_footprint(TM, TH, Fp, x_sz, w_sz, o_sz, *, multi_k, f32_out):
    b = 0
    b += 2 * TM * Fp * x_sz          # x tile, double-buffered
    b += 2 * TM * Fp * o_sz          # out tile, double-buffered
    b += 2 * Fp * TH * w_sz          # w1 slab, double-buffered
    b += 2 * TH * Fp * w_sz          # w2 slab, double-buffered
    b += 2 * (TH + Fp) * 4           # biases (f32)
    b += TM * TH * (4 + w_sz)        # GELU intermediate (f32 + cast copy)
    if multi_k and not f32_out:
        b += TM * Fp * 4             # f32 accumulator scratch
    return b


def _choose_tiles(n, Fp, Hp, x_sz, w_sz, o_sz, budget, row_align, f32_out):
    n_rows = _round_up(max(n, 1), row_align)

    # 1) Prefer weights fully VMEM-resident (single pass: each weight matrix is
    #    DMA'd exactly once for the whole kernel).  Prefer the largest row tile.
    for tm in (1024, 512, 256, 128):
        TM = min(tm, n_rows)
        if _tile_footprint(TM, Hp, Fp, x_sz, w_sz, o_sz,
                           multi_k=False, f32_out=f32_out) <= budget:
            return TM, Hp, False

    # 2) Fall back to streaming the hidden dim in TH slabs (reduction axis).
    #    TH must divide the pre-padded Hp so weights can be used as-is.
    th_candidates = [t for t in (2048, 1024, 512, 256, 128) if Hp % t == 0]
    for tm in (512, 256, 128):
        TM = min(tm, n_rows)
        for th in th_candidates:
            if _tile_footprint(TM, th, Fp, x_sz, w_sz, o_sz,
                               multi_k=True, f32_out=f32_out) <= budget:
                return TM, th, True

    # 3) Last resort (very large F): smallest tiles.
    # TODO(synk): add an F-contraction inner loop for F so large that a single
    # (Fp, 128) w1 slab cannot fit VMEM (e.g. F >= 8192 in f32 on v7x).
    return min(128, n_rows), 128, True


# ---------------------------------------------------------------------------
# Public API
# ---------------------------------------------------------------------------

def make_feedforward(w1, b1, w2, b2, *, compute_dtype=jnp.bfloat16,
                     out_dtype=None, gelu_approx=False, vmem_budget_bytes=None):
    """Build a fused FNet FeedForward: fc1 -> GELU -> dropout -> fc2 -> dropout.

    w1: (F, H), b1: (H,), w2: (H, F), b2: (F,).
    compute_dtype: MXU operand dtype (default bf16; pass jnp.float32 for
      bit-parity with the PyTorch f32 module).  Accumulation is always f32.
    Weights are padded and cast exactly once here (not per forward call).
    Dropout is eval-mode identity.
    """
    F_in, H = w1.shape
    assert w2.shape == (H, F_in) and b1.shape == (H,) and b2.shape == (F_in,)

    w_dt = jnp.dtype(compute_dtype)
    Fp = _round_up(F_in, 128)   # lane-dense output / full MXU N dim
    Hp = _round_up(H, 128)

    # Pre-pad (zeros -> exact results) + pre-cast parameters once.
    w1p = jnp.pad(jnp.asarray(w1, w_dt), ((0, Fp - F_in), (0, Hp - H)))
    w2p = jnp.pad(jnp.asarray(w2, w_dt), ((0, Hp - H), (0, Fp - F_in)))
    b1p = jnp.pad(jnp.asarray(b1, jnp.float32), ((0, Hp - H),)).reshape(1, Hp)
    b2p = jnp.pad(jnp.asarray(b2, jnp.float32), ((0, Fp - F_in),)).reshape(1, Fp)
    params = (w1p, b1p, w2p, b2p)

    gelu = _gelu_tanh if gelu_approx else _gelu_exact

    vmem_cap = _vmem_capacity_bytes()
    # ~80% of chip VMEM for pipeline buffers; rest left for internal scratch.
    budget = int(0.8 * vmem_cap) if vmem_budget_bytes is None else int(vmem_budget_bytes)

    @jax.jit
    def apply(params, x):
        w1p, b1p, w2p, b2p = params
        assert x.shape[-1] == F_in
        out_dt = jnp.dtype(out_dtype) if out_dtype is not None else jnp.dtype(x.dtype)
        f32_out = out_dt == jnp.float32

        lead = x.shape[:-1]
        n = 1
        for d in lead:
            n *= d

        x_dt = w_dt
        x_sz = x_dt.itemsize
        w_sz = w_dt.itemsize
        o_sz = out_dt.itemsize
        row_align = max(8, 32 // x_sz)   # bf16 packs 16 rows/sublane-group

        TM, TH, multi_k = _choose_tiles(n, Fp, Hp, x_sz, w_sz, o_sz,
                                        budget, row_align, f32_out)
        n_pad = _round_up(max(n, 1), TM)
        num_row_tiles = n_pad // TM

        # Pad only the activations per call.
        x2 = jnp.asarray(x, x_dt).reshape(n, F_in)
        x2 = jnp.pad(x2, ((0, n_pad - n), (0, Fp - F_in)))

        # Cost estimate (includes weight re-streaming when hidden dim is tiled).
        weight_reads = num_row_tiles if multi_k else 1
        cost = pl.CostEstimate(
            flops=4 * n_pad * Fp * Hp,
            transcendentals=n_pad * Hp,
            bytes_accessed=(n_pad * Fp * (x_sz + o_sz)
                            + weight_reads * 2 * Fp * Hp * w_sz
                            + (Hp + Fp) * 4),
        )

        footprint = _tile_footprint(TM, TH, Fp, x_sz, w_sz, o_sz,
                                    multi_k=multi_k, f32_out=f32_out)
        vmem_limit = int(min(int(0.9 * vmem_cap),
                             max(32 * 1024 * 1024, int(1.25 * footprint))))

        if not multi_k:
            grid = (num_row_tiles,)
            kernel = functools.partial(_ffn_kernel_resident, gelu=gelu)
            in_specs = [
                pl.BlockSpec((TM, Fp), lambda i: (i, 0)),    # x rows stream
                pl.BlockSpec((Fp, Hp), lambda i: (0, 0)),    # w1 resident
                pl.BlockSpec((1, Hp), lambda i: (0, 0)),     # b1 resident
                pl.BlockSpec((Hp, Fp), lambda i: (0, 0)),    # w2 resident
                pl.BlockSpec((1, Fp), lambda i: (0, 0)),     # b2 resident
            ]
            out_specs = pl.BlockSpec((TM, Fp), lambda i: (i, 0))
            scratch_shapes = ()
            dim_sem = ("parallel",)
        else:
            grid = (num_row_tiles, Hp // TH)
            if f32_out:
                kernel = functools.partial(_ffn_kernel_multi_f32out, gelu=gelu)
                scratch_shapes = ()
            else:
                kernel = functools.partial(_ffn_kernel_multi_acc, gelu=gelu)
                scratch_shapes = (pltpu.VMEM((TM, Fp), jnp.float32),)
            in_specs = [
                pl.BlockSpec((TM, Fp), lambda i, k: (i, 0)),  # x rows stream
                pl.BlockSpec((Fp, TH), lambda i, k: (0, k)),  # w1 hidden slabs
                pl.BlockSpec((1, TH), lambda i, k: (0, k)),   # b1 hidden slabs
                pl.BlockSpec((TH, Fp), lambda i, k: (k, 0)),  # w2 hidden slabs
                pl.BlockSpec((1, Fp), lambda i, k: (0, 0)),   # b2 resident
            ]
            out_specs = pl.BlockSpec((TM, Fp), lambda i, k: (i, 0))
            dim_sem = ("parallel", "arbitrary")

        out = pl.pallas_call(
            kernel,
            out_shape=jax.ShapeDtypeStruct((n_pad, Fp), out_dt),
            grid_spec=pltpu.PrefetchScalarGridSpec(
                num_scalar_prefetch=0,
                grid=grid,
                in_specs=in_specs,
                out_specs=out_specs,
                scratch_shapes=scratch_shapes,
            ),
            compiler_params=pltpu.CompilerParams(
                dimension_semantics=dim_sem,
                vmem_limit_bytes=vmem_limit,
            ),
            cost_estimate=cost,
        )(x2, w1p, b1p, w2p, b2p)

        return out[:n, :F_in].reshape(lead + (F_in,))

    return lambda x: apply(params, x)


def init_linear_params(key, in_features, out_features):
    # Mirrors nn.Linear default init: U(-1/sqrt(fan_in), 1/sqrt(fan_in)).
    kw, kb = jax.random.split(key)
    bound = 1.0 / math.sqrt(in_features)
    # Stored as (in_features, out_features) = transpose of PyTorch's weight.
    w = jax.random.uniform(kw, (in_features, out_features), jnp.float32, -bound, bound)
    b = jax.random.uniform(kb, (out_features,), jnp.float32, -bound, bound)
    return w, b


if __name__ == "__main__":
    # Shapes consistent with the module: num_features=32, expansion_factor=4.
    B, S = 2, 8
    num_features = 32
    expansion_factor = 4
    num_hidden = expansion_factor * num_features  # 128

    key = jax.random.PRNGKey(0)
    kx, k1, k2 = jax.random.split(key, 3)

    x = jax.random.normal(kx, (B, S, num_features), jnp.float32)
    w1, b1 = init_linear_params(k1, num_features, num_hidden)   # fc1
    w2, b2 = init_linear_params(k2, num_hidden, num_features)   # fc2

    # Pure-JAX reference (eval-mode dropout == identity).
    ref = jnp.dot(_gelu_exact(jnp.dot(x, w1) + b1), w2) + b2

    # 1) Default fast path: bf16 MXU operands, f32 accumulation, weights resident.
    ffn_bf16 = make_feedforward(w1, b1, w2, b2)
    out_bf16 = jax.block_until_ready(ffn_bf16(x))
    assert out_bf16.shape == (B, S, num_features)
    assert out_bf16.dtype == x.dtype
    assert jnp.allclose(out_bf16, ref, atol=1e-1, rtol=1e-1)

    # 2) f32 parity path (bit-faithful to the PyTorch f32 default).
    ffn_f32 = make_feedforward(w1, b1, w2, b2, compute_dtype=jnp.float32)
    out_f32 = jax.block_until_ready(ffn_f32(x))
    assert jnp.allclose(out_f32, ref, atol=1e-4, rtol=1e-4)

    # 3) Exercise the hidden-dim-streaming (multi-k) fallback by forcing a tiny
    #    tile-selection budget on a larger H: covers both the output-as-accumulator
    #    (f32 out) and the f32-scratch-accumulator (bf16 out) kernels.
    H2 = 8 * num_features  # 256 -> two 128-wide hidden slabs
    w1b, b1b = init_linear_params(jax.random.PRNGKey(3), num_features, H2)
    w2b, b2b = init_linear_params(jax.random.PRNGKey(4), H2, num_features)
    ref2 = jnp.dot(_gelu_exact(jnp.dot(x, w1b) + b1b), w2b) + b2b

    ffn_multi_f32out = make_feedforward(w1b, b1b, w2b, b2b, vmem_budget_bytes=1)
    out_multi = jax.block_until_ready(ffn_multi_f32out(x))
    assert jnp.allclose(out_multi, ref2, atol=1e-1, rtol=1e-1)

    ffn_multi_bf16out = make_feedforward(w1b, b1b, w2b, b2b,
                                         out_dtype=jnp.bfloat16,
                                         vmem_budget_bytes=1)
    out_multi_bf = jax.block_until_ready(ffn_multi_bf16out(x))
    assert jnp.allclose(out_multi_bf.astype(jnp.float32), ref2, atol=1e-1, rtol=1e-1)

    print("KERNEL_OK")
</pallas_src>

<mosaic_0001>
module attributes {stable_mosaic.version = 11 : i64} {
  func.func @_ffn_kernel_resident(%arg0: i32, %arg1: memref<16x128xbf16, #tpu.memory_space<vmem>>, %arg2: memref<128x128xbf16, #tpu.memory_space<vmem>>, %arg3: memref<1x128xf32, #tpu.memory_space<vmem>>, %arg4: memref<128x128xbf16, #tpu.memory_space<vmem>>, %arg5: memref<1x128xf32, #tpu.memory_space<vmem>>, %arg6: memref<16x128xf32, #tpu.memory_space<vmem>>) attributes {dimension_semantics = [#tpu.dimension_semantics<parallel>], iteration_bounds = array<i64: 1>, scalar_prefetch = 0 : i64, scratch_operands = 0 : i64, tpu.core_type = #tpu.core_type<tc>, window_params = [{transform_indices = @transform_0, window_bounds = array<i64: 16, 128>}, {pipeline_mode = #tpu.pipeline_mode<synchronous>, transform_indices = @transform_1, window_bounds = array<i64: 128, 128>}, {pipeline_mode = #tpu.pipeline_mode<synchronous>, transform_indices = @transform_2, window_bounds = array<i64: 1, 128>}, {pipeline_mode = #tpu.pipeline_mode<synchronous>, transform_indices = @transform_3, window_bounds = array<i64: 128, 128>}, {pipeline_mode = #tpu.pipeline_mode<synchronous>, transform_indices = @transform_4, window_bounds = array<i64: 1, 128>}, {transform_indices = @transform_5, window_bounds = array<i64: 16, 128>}]} {
    %c0 = arith.constant 0 : index
    %c0_0 = arith.constant 0 : index
    %0 = vector.load %arg1[%c0, %c0_0] : memref<16x128xbf16, #tpu.memory_space<vmem>>, vector<16x128xbf16>
    %c0_1 = arith.constant 0 : index
    %c0_2 = arith.constant 0 : index
    %1 = vector.load %arg2[%c0_1, %c0_2] : memref<128x128xbf16, #tpu.memory_space<vmem>>, vector<128x128xbf16>
    %cst = arith.constant dense<0.000000e+00> : vector<16x128xf32>
    %2 = tpu.matmul %0, %1, %cst {dimension_numbers = #tpu.dot_dimension_numbers<[1], [0], [0], [1], [0, 0, 1, 1], [], []>} : vector<16x128xbf16>, vector<128x128xbf16>, vector<16x128xf32> -> vector<16x128xf32>
    %c0_3 = arith.constant 0 : index
    %c0_4 = arith.constant 0 : index
    %3 = vector.load %arg3[%c0_3, %c0_4] : memref<1x128xf32, #tpu.memory_space<vmem>>, vector<1x128xf32>
    %4 = vector.broadcast %3 : vector<1x128xf32> to vector<16x128xf32>
    %5 = arith.addf %2, %4 : vector<16x128xf32>
    %cst_5 = arith.constant 5.000000e-01 : f32
    %6 = vector.broadcast %cst_5 : f32 to vector<16x128xf32>
    %7 = arith.mulf %6, %5 : vector<16x128xf32>
    %cst_6 = arith.constant 0.707106769 : f32
    %8 = vector.broadcast %cst_6 : f32 to vector<16x128xf32>
    %9 = arith.mulf %5, %8 : vector<16x128xf32>
    %10 = math.erf %9 : vector<16x128xf32>
    %cst_7 = arith.constant 1.000000e+00 : f32
    %11 = vector.broadcast %cst_7 : f32 to vector<16x128xf32>
    %12 = arith.addf %11, %10 : vector<16x128xf32>
    %13 = arith.mulf %7, %12 : vector<16x128xf32>
    %14 = arith.truncf %13 : vector<16x128xf32> to vector<16x128xbf16>
    %c0_8 = arith.constant 0 : index
    %c0_9 = arith.constant 0 : index
    %15 = vector.load %arg4[%c0_8, %c0_9] : memref<128x128xbf16, #tpu.memory_space<vmem>>, vector<128x128xbf16>
    %cst_10 = arith.constant dense<0.000000e+00> : vector<16x128xf32>
    %16 = tpu.matmul %14, %15, %cst_10 {dimension_numbers = #tpu.dot_dimension_numbers<[1], [0], [0], [1], [0, 0, 1, 1], [], []>} : vector<16x128xbf16>, vector<128x128xbf16>, vector<16x128xf32> -> vector<16x128xf32>
    %c0_11 = arith.constant 0 : index
    %c0_12 = arith.constant 0 : index
    %17 = vector.load %arg5[%c0_11, %c0_12] : memref<1x128xf32, #tpu.memory_space<vmem>>, vector<1x128xf32>
    %18 = vector.broadcast %17 : vector<1x128xf32> to vector<16x128xf32>
    %19 = arith.addf %16, %18 : vector<16x128xf32>
    %c0_13 = arith.constant 0 : index
    %c0_14 = arith.constant 0 : index
    %20 = vector.load %arg6[%c0_13, %c0_14] : memref<16x128xf32, #tpu.memory_space<vmem>>, vector<16x128xf32>
    tpu.vector_store %arg6[%c0_13, %c0_14], %19 {strides = array<i32>} : memref<16x128xf32, #tpu.memory_space<vmem>>, vector<16x128xf32>,
    return
  }
  func.func @transform_0(%arg0: i32) -> (i32, i32) {
    %c0_i32 = arith.constant 0 : i32
    %c0_i32_0 = arith.constant 0 : i32
    return %arg0, %c0_i32 : i32, i32
  }
  func.func @transform_1(%arg0: i32) -> (i32, i32) {
    %c0_i32 = arith.constant 0 : i32
    %c0_i32_0 = arith.constant 0 : i32
    %c0_i32_1 = arith.constant 0 : i32
    return %c0_i32, %c0_i32_0 : i32, i32
  }
  func.func @transform_2(%arg0: i32) -> (i32, i32) {
    %c0_i32 = arith.constant 0 : i32
    %c0_i32_0 = arith.constant 0 : i32
    %c0_i32_1 = arith.constant 0 : i32
    return %c0_i32, %c0_i32_0 : i32, i32
  }
  func.func @transform_3(%arg0: i32) -> (i32, i32) {
    %c0_i32 = arith.constant 0 : i32
    %c0_i32_0 = arith.constant 0 : i32
    %c0_i32_1 = arith.constant 0 : i32
    return %c0_i32, %c0_i32_0 : i32, i32
  }
  func.func @transform_4(%arg0: i32) -> (i32, i32) {
    %c0_i32 = arith.constant 0 : i32
    %c0_i32_0 = arith.constant 0 : i32
    %c0_i32_1 = arith.constant 0 : i32
    return %c0_i32, %c0_i32_0 : i32, i32
  }
  func.func @transform_5(%arg0: i32) -> (i32, i32) {
    %c0_i32 = arith.constant 0 : i32
    %c0_i32_0 = arith.constant 0 : i32
    return %arg0, %c0_i32 : i32, i32
  }
}

</mosaic_0001>

<llo_original>
// kernel: apply.1
$region0: #{apply.1}
  #allocation0 [shape = 'u32[]', space=smem, size = 0x4, offset = 0x4, fixed_abs, tag = 'smem constant byte address 0x4 - core index']
  #allocation1 [shape = 'u32[144,128]{1,0:T(1,128)}', space=vmem, size = 0x12000, scoped, tag = 'internal scratch']
  %s0 = inlined_call_operand.vmem [shape: bf16[16,128], index: 0, kind: input, shape index: {}]
  %s1 = inlined_call_operand.hbm [shape: bf16[128,128], index: 1, kind: input, shape index: {}]
  %s2 = inlined_call_operand.vmem [shape: f32[1,128], index: 2, kind: input, shape index: {}]
  %s3 = inlined_call_operand.hbm [shape: bf16[128,128], index: 3, kind: input, shape index: {}]
  %s4 = inlined_call_operand.vmem [shape: f32[1,128], index: 4, kind: input, shape index: {}]
  %s5 = inlined_call_operand.vmem [shape: f32[16,128], index: 5, kind: output, shape index: {}]
  %s6 = sld [smem:[#allocation0]]
  $region38: #{apply.1} parent=0
    _
  %s8 = ssub.s32 1, %s6
  %s9 = scalar_select 0, %s8, %s6
  $region1: #{apply.1} parent=0
    #allocation2 [shape = 'u8[32768]{0}', space=vmem, size = 0x8000, scoped, tag = 'input window, operand 1, single buffered']
    #allocation3 [shape = 's32[1]{0}', space=sflag, size = 0x4, scoped, tag = 'scoped memory for apply.1']
    #allocation4 [shape = 'u8[32768]{0}', space=vmem, size = 0x8000, scoped, tag = 'input window, operand 3, single buffered']
    #allocation5 [shape = 's32[1]{0}', space=sflag, size = 0x4, scoped, tag = 'scoped memory for apply.1']
    %10 = vsyncpa [#allocation3], 0
    %11 = vsyncpa [#allocation5], 0
    // Predicated region
    $region2: #{apply.1} parent=1 // pred_check
      _
    $region3: #{apply.1} parent=1 // pred_check_branch
      %13 = sbr.rel (0) target = $region5
    $region4: #{apply.1} parent=1 // pred_region
      _
    $region5: #{apply.1} parent=1 // pred_fallthru
      _
    // Predicated region
    $region6: #{apply.1} parent=1 // pred_check
      _
    $region7: #{apply.1} parent=1 // pred_check_branch
      %15 = sbr.rel (0) target = $region9
    $region8: #{apply.1} parent=1 // pred_region
      %s17 = ssub.s32 1024, 1024
      %18 = vsyncadd [#allocation3], %s17
      %s19 = sshll.u32 [#allocation2], 4
      %s20 = int_to_ptr.vmem [resolvable:$true] %s19
      %25 = dma.hbm_to_vmem [thread:$0]  %s1, 1024, %s20, [#allocation3], 64, 64, 4
    $region9: #{apply.1} parent=1 // pred_fallthru
      _
    // Predicated region
    $region10: #{apply.1} parent=1 // pred_check
      _
    $region11: #{apply.1} parent=1 // pred_check_branch
      %27 = sbr.rel (0) target = $region13
    $region12: #{apply.1} parent=1 // pred_region
      _
    $region13: #{apply.1} parent=1 // pred_fallthru
      _
    // Predicated region
    $region14: #{apply.1} parent=1 // pred_check
      _
    $region15: #{apply.1} parent=1 // pred_check_branch
      %29 = sbr.rel (0) target = $region17
    $region16: #{apply.1} parent=1 // pred_region
      %s31 = ssub.s32 1024, 1024
      %32 = vsyncadd [#allocation5], %s31
      %s33 = sshll.u32 [#allocation4], 4
      %s34 = int_to_ptr.vmem [resolvable:$true] %s33
      %39 = dma.hbm_to_vmem [thread:$0]  %s3, 1024, %s34, [#allocation5], 64, 64, 4
    $region17: #{apply.1} parent=1 // pred_fallthru
      _
    // Predicated region
    $region18: #{apply.1} parent=1 // pred_check
      _
    $region19: #{apply.1} parent=1 // pred_check_branch
      %41 = sbr.rel (0) target = $region21
    $region20: #{apply.1} parent=1 // pred_region
      _
    $region21: #{apply.1} parent=1 // pred_fallthru
      _
    // Predicated region
    $region22: #{apply.1} parent=1 // pred_check
      _
    $region23: #{apply.1} parent=1 // pred_check_branch
      %43 = sbr.rel (0) target = $region25
    $region24: #{apply.1} parent=1 // pred_region
      %44 = dma.done [#allocation3], 1024
    $region25: #{apply.1} parent=1 // pred_fallthru
      _
    // Predicated region
    $region26: #{apply.1} parent=1 // pred_check
      _
    $region27: #{apply.1} parent=1 // pred_check_branch
      %46 = sbr.rel (0) target = $region29
    $region28: #{apply.1} parent=1 // pred_region
      %47 = dma.done [#allocation5], 1024
    $region29: #{apply.1} parent=1 // pred_fallthru
      _
    %v49 = vld [vmem:[%s0] sm:$0xf]
    %v50 = vld [vmem:[%s0 + $0x4] sm:$0xf]
    %v51 = vld [vmem:[#allocation2] sm:$0xf]
    %v52 = vld [vmem:[#allocation2 + $0x4] sm:$0xf]
    %v53 = vld [vmem:[#allocation2 + $0x8] sm:$0xf]
    %v54 = vld [vmem:[#allocation2 + $0xc] sm:$0xf]
    %v55 = vld [vmem:[#allocation2 + $0x10] sm:$0xf]
    %v56 = vld [vmem:[#allocation2 + $0x14] sm:$0xf]
    %v57 = vld [vmem:[#allocation2 + $0x18] sm:$0xf]
    %v58 = vld [vmem:[#allocation2 + $0x1c] sm:$0xf]
    %v59 = vld [vmem:[#allocation2 + $0x20] sm:$0xf]
    %v60 = vld [vmem:[#allocation2 + $0x24] sm:$0xf]
    %v61 = vld [vmem:[#allocation2 + $0x28] sm:$0xf]
    %v62 = vld [vmem:[#allocation2 + $0x2c] sm:$0xf]
    %v63 = vld [vmem:[#allocation2 + $0x30] sm:$0xf]
    %v64 = vld [vmem:[#allocation2 + $0x34] sm:$0xf]
    %v65 = vld [vmem:[#allocation2 + $0x38] sm:$0xf]
    %v66 = vld [vmem:[#allocation2 + $0x3c] sm:$0xf]
    %v67 = vld [vmem:[%s2] sm:$0x1]
    %v69 = vlaneseq
    %v70 = vshrl.u32 %v69, 7
    %v71 = vsub.s32 0, %v70
    %v72 = vrot.slane %v67, %v71
    %v76 = vunpack.c.l.b16 %v49
    %v77 = vunpack.c.l.b16 %v50
    %v78 = vpack.c.b16 %v77, %v76
    %v96 = vunpack.c.l.b16 %v51
    %v97 = vunpack.c.l.b16 %v52
    %v98 = vunpack.c.l.b16 %v53
    %v99 = vunpack.c.l.b16 %v54
    %v100 = vunpack.c.l.b16 %v55
    %v101 = vunpack.c.l.b16 %v56
    %v102 = vunpack.c.l.b16 %v57
    %v103 = vunpack.c.l.b16 %v58
    %v104 = vunpack.c.l.b16 %v59
    %v105 = vunpack.c.l.b16 %v60
    %v106 = vunpack.c.l.b16 %v61
    %v107 = vunpack.c.l.b16 %v62
    %v108 = vunpack.c.l.b16 %v63
    %v109 = vunpack.c.l.b16 %v64
    %v110 = vunpack.c.l.b16 %v65
    %v111 = vunpack.c.l.b16 %v66
    %v112 = vpack.c.b16 %v97, %v96
    %v113 = vpack.c.b16 %v99, %v98
    %v114 = vpack.c.b16 %v101, %v100
    %v115 = vpack.c.b16 %v103, %v102
    %v116 = vpack.c.b16 %v105, %v104
    %v117 = vpack.c.b16 %v107, %v106
    %v118 = vpack.c.b16 %v109, %v108
    %v119 = vpack.c.b16 %v111, %v110
    %128 = vmatprep.subr.bf16.mxu0 0
    %129 = vmatpush1.bf16.msra.mxu0 %v112
    %130 = vmatprep.subr.bf16.mxu0 0
    %131 = vmatpush1.bf16.msra.mxu0 %v113
    %132 = vmatprep.subr.bf16.mxu0 0
    %133 = vmatpush1.bf16.msra.mxu0 %v114
    %134 = vmatprep.subr.bf16.mxu0 0
    %135 = vmatpush1.bf16.msra.mxu0 %v115
    %136 = vmatprep.subr.bf16.mxu0 0
    %137 = vmatpush1.bf16.msra.mxu0 %v116
    %138 = vmatprep.subr.bf16.mxu0 0
    %139 = vmatpush1.bf16.msra.mxu0 %v117
    %140 = vmatprep.subr.bf16.mxu0 0
    %141 = vmatpush1.bf16.msra.mxu0 %v118
    %142 = vmatprep.subr.bf16.mxu0 0
    %143 = vmatpush1.bf16.msra.mxu0 %v119
    %144 = vmatprep.subr.bf16.mxu0 0
    %145 = vmatpush1.bf16.msra.mxu0 0
    %146 = vmatprep.subr.bf16.mxu0 0
    %147 = vmatpush1.bf16.msra.mxu0 0
    %148 = vmatprep.subr.bf16.mxu0 0
    %149 = vmatpush1.bf16.msra.mxu0 0
    %150 = vmatprep.subr.bf16.mxu0 0
    %151 = vmatpush1.bf16.msra.mxu0 0
    %152 = vmatprep.subr.bf16.mxu0 0
    %153 = vmatpush1.bf16.msra.mxu0 0
    %154 = vmatprep.subr.bf16.mxu0 0
    %155 = vmatpush1.bf16.msra.mxu0 0
    %156 = vmatprep.subr.bf16.mxu0 0
    %157 = vmatpush1.bf16.msra.mxu0 0
    %158 = vmatprep.subr.bf16.mxu0 0
    %159 = vmatpush1.bf16.msra.mxu0 0
    %160 = vmatprep.mubr.bf16.mxu0 0
    %161 = vmatmul.mubr.bf16.gmra.mrb[0].mxu0 %v78
    %v162 = vpop.f32.mrb[0].mxu0
    %v163 = vadd.f32 %v72, %v162
    %v164 = vpop.f32.mrb[0].mxu0
    %v165 = vpop.f32.mrb[0].mxu0
    %v166 = vadd.f32 %v72, %v165
    %v167 = vpop.f32.mrb[0].mxu0
    %168 = vdwg.mxu0
    %v169 = vmul.f32 %v163, 0.5
    %v170 = vmul.f32 %v166, 0.5
    %v171 = vmul.f32 %v163, 0.70710677
    %v172 = vmul.f32 %v166, 0.70710677
    %v173 = verf.f32.pop %v171
    %v174 = verf.f32.pop %v172
    %v175 = vadd.f32 %v173, 1.0
    %v176 = vadd.f32 %v174, 1.0
    %v177 = vmul.f32 %v169, %v175
    %v178 = vmul.f32 %v170, %v176
    %v179 = vpack.c.bf16 %v178, %v177
    %v180 = vld [vmem:[#allocation4] sm:$0xf]
    %v181 = vld [vmem:[#allocation4 + $0x4] sm:$0xf]
    %v182 = vld [vmem:[#allocation4 + $0x8] sm:$0xf]
    %v183 = vld [vmem:[#allocation4 + $0xc] sm:$0xf]
    %v184 = vld [vmem:[#allocation4 + $0x10] sm:$0xf]
    %v185 = vld [vmem:[#allocation4 + $0x14] sm:$0xf]
    %v186 = vld [vmem:[#allocation4 + $0x18] sm:$0xf]
    %v187 = vld [vmem:[#allocation4 + $0x1c] sm:$0xf]
    %v188 = vld [vmem:[#allocation4 + $0x20] sm:$0xf]
    %v189 = vld [vmem:[#allocation4 + $0x24] sm:$0xf]
    %v190 = vld [vmem:[#allocation4 + $0x28] sm:$0xf]
    %v191 = vld [vmem:[#allocation4 + $0x2c] sm:$0xf]
    %v192 = vld [vmem:[#allocation4 + $0x30] sm:$0xf]
    %v193 = vld [vmem:[#allocation4 + $0x34] sm:$0xf]
    %v194 = vld [vmem:[#allocation4 + $0x38] sm:$0xf]
    %v195 = vld [vmem:[#allocation4 + $0x3c] sm:$0xf]
    %v196 = vld [vmem:[%s4] sm:$0x1]
    %v198 = vlaneseq
    %v199 = vshrl.u32 %v198, 7
    %v200 = vsub.s32 0, %v199
    %v201 = vrot.slane %v196, %v200
    %v219 = vunpack.c.l.b16 %v180
    %v220 = vunpack.c.l.b16 %v181
    %v221 = vunpack.c.l.b16 %v182
    %v222 = vunpack.c.l.b16 %v183
    %v223 = vunpack.c.l.b16 %v184
    %v224 = vunpack.c.l.b16 %v185
    %v225 = vunpack.c.l.b16 %v186
    %v226 = vunpack.c.l.b16 %v187
    %v227 = vunpack.c.l.b16 %v188
    %v228 = vunpack.c.l.b16 %v189
    %v229 = vunpack.c.l.b16 %v190
    %v230 = vunpack.c.l.b16 %v191
    %v231 = vunpack.c.l.b16 %v192
    %v232 = vunpack.c.l.b16 %v193
    %v233 = vunpack.c.l.b16 %v194
    %v234 = vunpack.c.l.b16 %v195
    %v235 = vpack.c.b16 %v220, %v219
    %v236 = vpack.c.b16 %v222, %v221
    %v237 = vpack.c.b16 %v224, %v223
    %v238 = vpack.c.b16 %v226, %v225
    %v239 = vpack.c.b16 %v228, %v227
    %v240 = vpack.c.b16 %v230, %v229
    %v241 = vpack.c.b16 %v232, %v231
    %v242 = vpack.c.b16 %v234, %v233
    %251 = vmatprep.subr.bf16.mxu0 0
    %252 = vmatpush1.bf16.msra.mxu0 %v235
    %253 = vmatprep.subr.bf16.mxu0 0
    %254 = vmatpush1.bf16.msra.mxu0 %v236
    %255 = vmatprep.subr.bf16.mxu0 0
    %256 = vmatpush1.bf16.msra.mxu0 %v237
    %257 = vmatprep.subr.bf16.mxu0 0
    %258 = vmatpush1.bf16.msra.mxu0 %v238
    %259 = vmatprep.subr.bf16.mxu0 0
    %260 = vmatpush1.bf16.msra.mxu0 %v239
    %261 = vmatprep.subr.bf16.mxu0 0
    %262 = vmatpush1.bf16.msra.mxu0 %v240
    %263 = vmatprep.subr.bf16.mxu0 0
    %264 = vmatpush1.bf16.msra.mxu0 %v241
    %265 = vmatprep.subr.bf16.mxu0 0
    %266 = vmatpush1.bf16.msra.mxu0 %v242
    %267 = vmatprep.subr.bf16.mxu0 0
    %268 = vmatpush1.bf16.msra.mxu0 0
    %269 = vmatprep.subr.bf16.mxu0 0
    %270 = vmatpush1.bf16.msra.mxu0 0
    %271 = vmatprep.subr.bf16.mxu0 0
    %272 = vmatpush1.bf16.msra.mxu0 0
    %273 = vmatprep.subr.bf16.mxu0 0
    %274 = vmatpush1.bf16.msra.mxu0 0
    %275 = vmatprep.subr.bf16.mxu0 0
    %276 = vmatpush1.bf16.msra.mxu0 0
    %277 = vmatprep.subr.bf16.mxu0 0
    %278 = vmatpush1.bf16.msra.mxu0 0
    %279 = vmatprep.subr.bf16.mxu0 0
    %280 = vmatpush1.bf16.msra.mxu0 0
    %281 = vmatprep.subr.bf16.mxu0 0
    %282 = vmatpush1.bf16.msra.mxu0 0
    %283 = vmatprep.mubr.bf16.mxu0 0
    %284 = vmatmul.mubr.bf16.gmra.mrb[0].mxu0 %v179
    %v285 = vpop.f32.mrb[0].mxu0
    %v286 = vadd.f32 %v201, %v285
    %v287 = vpop.f32.mrb[0].mxu0
    %v288 = vpop.f32.mrb[0].mxu0
    %v289 = vadd.f32 %v201, %v288
    %v290 = vpop.f32.mrb[0].mxu0
    %291 = vdwg.mxu0
    %292 = vst [vmem:[%s5] sm:$0xff] %v286
    %293 = vst [vmem:[%s5 + $0x8] sm:$0xff] %v289
    // Predicated region
    $region30: #{apply.1} parent=1 // pred_check
      _
    $region31: #{apply.1} parent=1 // pred_check_branch
      %295 = sbr.rel (0) target = $region33
    $region32: #{apply.1} parent=1 // pred_region
      _
    $region33: #{apply.1} parent=1 // pred_fallthru
      _
    // Predicated region
    $region34: #{apply.1} parent=1 // pred_check
      _
    $region35: #{apply.1} parent=1 // pred_check_branch
      %297 = sbr.rel (0) target = $region37
    $region36: #{apply.1} parent=1 // pred_region
      _
    $region37: #{apply.1} parent=1 // pred_fallthru
      _
    %298 = vsyncpa [#allocation3], 1
    %299 = vsyncpa [#allocation5], 1

</llo_original>
